<compile_context>
chip_gen: v6e
topology: v6e:2x2x1
jax: 0.10.0
libtpu: 0.0.40
codegen_flags: <defaults>
</compile_context>

<pallas_src>
import jax
import jax.numpy as jnp
from jax.experimental import pallas as pl
from jax.experimental.pallas import tpu as pltpu

ALIGN_N = 32                       # node-tile alignment (covers f32/bf16/int8 sublane tiling)
VMEM_DATA_BUDGET = 40 * 1024 * 1024   # tile-sizing budget (v7x VMEM is 64 MiB total)
VMEM_LIMIT_CAP = 56 * 1024 * 1024     # never request all of physical VMEM
XLA_FALLBACK_ELEMS = 32 * 1024        # below this, fused XLA beats kernel overheads


def _round_up(x, m):
    return (x + m - 1) // m * m


def edge_model_kernel(x_ref, w1_ref, b1_ref, w2_ref, b2_ref, o_ref):
    """relu(x @ W1 + b1) @ W2 + b2 for one (tile_n, in_dim) node tile."""
    w1 = w1_ref[...]
    w2 = w2_ref[...]
    # MXU matmul #1, f32 accumulation.  Casting x to the weight dtype makes the
    # bf16-storage path run the MXU at native bf16 rate (no-op for f32).
    h = jnp.dot(x_ref[...].astype(w1.dtype), w1, preferred_element_type=jnp.float32)
    # Bias add + ReLU stay in f32 on the VPU (v5e has no bf16 VPU/EUP).
    h = jnp.maximum(h + b1_ref[...].astype(jnp.float32), 0.0)
    # MXU matmul #2, f32 accumulation.  With bf16 weights the intermediate is
    # rounded to bf16 (native MXU operand); with f32 weights this cast is exact.
    y = jnp.dot(h.astype(w2.dtype), w2, preferred_element_type=jnp.float32)
    y = y + b2_ref[...].astype(jnp.float32)
    o_ref[...] = y.astype(o_ref.dtype)


def _edge_model_xla(x2, w1, b1, w2, b2):
    # Fused XLA path (small problems / feature dims too large for resident weights).
    h = jnp.maximum(
        jnp.dot(x2.astype(w1.dtype), w1, preferred_element_type=jnp.float32)
        + b1.astype(jnp.float32), 0.0)
    y = (jnp.dot(h.astype(w2.dtype), w2, preferred_element_type=jnp.float32)
         + b2.astype(jnp.float32))
    return y.astype(x2.dtype)


def edge_model(x, w1, b1, w2, b2, *, tile_n=None, use_pallas=None):
    """EdgeModel forward: relu(x @ w1 + b1) @ w2 + b2.

    x: (..., in_dim); w1: (in_dim, h_dim); b1: (h_dim,) or (1, h_dim);
    w2: (h_dim, h_dim); b2: (h_dim,) or (1, h_dim).  Returns (..., h_dim).
    Weights are stored transposed vs. PyTorch (x @ W layout).
    """
    in_dim, h_dim = w1.shape
    lead = x.shape[:-1]
    x2 = x.reshape(-1, in_dim)
    N = x2.shape[0]
    b1 = b1.reshape(1, h_dim)
    b2 = b2.reshape(1, h_dim)

    w_itemsize = jnp.dtype(w1.dtype).itemsize
    x_itemsize = jnp.dtype(x.dtype).itemsize

    def vmem_bytes(t):
        # Conservative model: weights/biases double-buffered (pipeline default),
        # streamed x/out tiles double-buffered, plus the live f32 intermediate.
        resident = 2 * (in_dim * h_dim + h_dim * h_dim + 2 * h_dim) * w_itemsize
        streamed = 2 * t * (in_dim * x_itemsize + h_dim * x_itemsize)
        live = t * h_dim * 4
        return resident + streamed + live

    weights_fit = vmem_bytes(ALIGN_N) <= VMEM_DATA_BUDGET
    if use_pallas is None:
        # Tiny problems: pad/slice passes + per-call/per-step overheads dominate;
        # a fused XLA matmul chain wins on all TPU generations.
        use_pallas = weights_fit and (N * h_dim >= XLA_FALLBACK_ELEMS)
    if (not use_pallas) or (not weights_fit):
        # TODO(synk): add a K/h-tiled reduction-grid Pallas path (f32 VMEM
        # accumulator + pl.when init/finalize, reduction axis "arbitrary") for
        # feature dims too large to keep weights resident, instead of XLA.
        return _edge_model_xla(x2, w1, b1, w2, b2).reshape(*lead, h_dim)

    # --- node-axis tiling: large, aligned, VMEM-budgeted --------------------
    n_aligned = _round_up(max(N, 1), ALIGN_N)
    if tile_n is None:
        tile_n = 1024                         # sweepable; >=512 rows ~85% of HBM roofline
    tile_n = _round_up(max(ALIGN_N, min(tile_n, n_aligned)), ALIGN_N)
    # Keep >= 2 grid steps once there is enough work to split, so the "parallel"
    # node axis spans both v7x TensorCores (and pipelines on v5e/v6e).
    half = _round_up((n_aligned + 1) // 2, ALIGN_N)
    if half >= 256:
        tile_n = min(tile_n, half)
    # Shrink until the tile fits the VMEM budget (headroom under v7x's 64 MiB).
    while tile_n > ALIGN_N and vmem_bytes(tile_n) > VMEM_DATA_BUDGET:
        tile_n = _round_up(max(ALIGN_N, tile_n // 2), ALIGN_N)

    n_p = _round_up(N, tile_n)
    grid = (n_p // tile_n,)

    # Only the node axis is padded (zero rows, discarded below).  Feature axes
    # are NOT lane-padded: last block dim == full array dim is legal and keeps
    # both the x reads and the output writes at minimal HBM bytes.
    xp = x2 if n_p == N else jnp.pad(x2, ((0, n_p - N), (0, 0)))

    vmem_limit = int(min(VMEM_LIMIT_CAP,
                         max(vmem_bytes(tile_n) + (4 << 20), 32 * 1024 * 1024)))

    out_p = pl.pallas_call(
        edge_model_kernel,
        out_shape=jax.ShapeDtypeStruct((n_p, h_dim), x.dtype),
        grid_spec=pltpu.PrefetchScalarGridSpec(
            num_scalar_prefetch=0,
            grid=grid,
            in_specs=[
                pl.BlockSpec((tile_n, in_dim), lambda i: (i, 0)),  # x tile (streamed)
                pl.BlockSpec((in_dim, h_dim), lambda i: (0, 0)),   # W1 (resident)
                pl.BlockSpec((1, h_dim), lambda i: (0, 0)),        # b1 (resident)
                pl.BlockSpec((h_dim, h_dim), lambda i: (0, 0)),    # W2 (resident)
                pl.BlockSpec((1, h_dim), lambda i: (0, 0)),        # b2 (resident)
            ],
            out_specs=pl.BlockSpec((tile_n, h_dim), lambda i: (i, 0)),
        ),
        compiler_params=pltpu.CompilerParams(
            dimension_semantics=("parallel",),   # node axis shards across TCs (v7x)
            vmem_limit_bytes=vmem_limit,
        ),
    )(xp, w1, b1, w2, b2)

    out = out_p if n_p == N else out_p[:N]
    return out.reshape(*lead, h_dim)


def init_params(key, in_dim, h_dim, dtype=jnp.float32):
    # Deterministic synthetic init (mimics PyTorch Linear's uniform fan-in init).
    k1, k2, k3, k4 = jax.random.split(key, 4)
    lim1 = 1.0 / jnp.sqrt(in_dim)
    lim2 = 1.0 / jnp.sqrt(h_dim)
    w1 = jax.random.uniform(k1, (in_dim, h_dim), dtype, -lim1, lim1)
    b1 = jax.random.uniform(k2, (1, h_dim), dtype, -lim1, lim1)
    w2 = jax.random.uniform(k3, (h_dim, h_dim), dtype, -lim2, lim2)
    b2 = jax.random.uniform(k4, (1, h_dim), dtype, -lim2, lim2)
    return w1, b1, w2, b2


if __name__ == "__main__":
    in_dim, h_dim = 16, 32
    n_edges = 8  # small "edge" batch

    key = jax.random.PRNGKey(0)
    kx, kp = jax.random.split(key)
    x = jax.random.normal(kx, (n_edges, in_dim), jnp.float32)
    w1, b1, w2, b2 = init_params(kp, in_dim, h_dim)

    # TPU matmuls at default precision may use bf16 passes on the kernel and/or
    # the XLA-reference side, so tolerances are set to comfortably cover that.
    TOL = dict(atol=2e-2, rtol=2e-2)

    # (1) Force the Pallas path even at this tiny size (auto mode would take
    #     the small-problem XLA fallback).
    out = jax.block_until_ready(edge_model(x, w1, b1, w2, b2, use_pallas=True))
    ref = jnp.maximum(x @ w1 + b1, 0.0) @ w2 + b2
    assert out.shape == (n_edges, h_dim)
    assert jnp.allclose(out, ref, **TOL)

    # (2) Multi-tile ragged node count: grid >= 2, padded rows discarded.
    x_big = jax.random.normal(kx, (1000, in_dim), jnp.float32)
    out_big = jax.block_until_ready(
        edge_model(x_big, w1, b1, w2, b2, tile_n=256, use_pallas=True))
    ref_big = jnp.maximum(x_big @ w1 + b1, 0.0) @ w2 + b2
    assert out_big.shape == (1000, h_dim)
    assert jnp.allclose(out_big, ref_big, **TOL)

    # (3) bf16 storage path (per perf review): halves streamed HBM bytes, runs
    #     the MXU at native bf16 rate; accumulation stays f32 in the kernel.
    xb = x_big.astype(jnp.bfloat16)
    w1b, b1b, w2b, b2b = (t.astype(jnp.bfloat16) for t in (w1, b1, w2, b2))
    out_bf = jax.block_until_ready(edge_model(xb, w1b, b1b, w2b, b2b, use_pallas=True))
    hb = jnp.maximum(xb.astype(jnp.float32) @ w1b.astype(jnp.float32)
                     + b1b.astype(jnp.float32), 0.0)
    ref_bf = (hb.astype(jnp.bfloat16).astype(jnp.float32) @ w2b.astype(jnp.float32)
              + b2b.astype(jnp.float32))
    assert jnp.allclose(out_bf.astype(jnp.float32), ref_bf, atol=5e-2, rtol=5e-2)

    # (4) Auto mode on the tiny problem exercises the fused-XLA fallback.
    out_auto = jax.block_until_ready(edge_model(x, w1, b1, w2, b2))
    assert jnp.allclose(out_auto, ref, **TOL)

    print("KERNEL_OK")
</pallas_src>

<mosaic_0001>
module attributes {stable_mosaic.version = 11 : i64} {
  func.func @edge_model_kernel(%arg0: i32, %arg1: memref<32x16xf32, #tpu.memory_space<vmem>>, %arg2: memref<16x32xf32, #tpu.memory_space<vmem>>, %arg3: memref<1x32xf32, #tpu.memory_space<vmem>>, %arg4: memref<32x32xf32, #tpu.memory_space<vmem>>, %arg5: memref<1x32xf32, #tpu.memory_space<vmem>>, %arg6: memref<32x32xf32, #tpu.memory_space<vmem>>) attributes {dimension_semantics = [#tpu.dimension_semantics<parallel>], iteration_bounds = array<i64: 1>, scalar_prefetch = 0 : i64, scratch_operands = 0 : i64, tpu.core_type = #tpu.core_type<tc>, window_params = [{transform_indices = @transform_0, window_bounds = array<i64: 32, 16>}, {pipeline_mode = #tpu.pipeline_mode<synchronous>, transform_indices = @transform_1, window_bounds = array<i64: 16, 32>}, {pipeline_mode = #tpu.pipeline_mode<synchronous>, transform_indices = @transform_2, window_bounds = array<i64: 1, 32>}, {pipeline_mode = #tpu.pipeline_mode<synchronous>, transform_indices = @transform_3, window_bounds = array<i64: 32, 32>}, {pipeline_mode = #tpu.pipeline_mode<synchronous>, transform_indices = @transform_4, window_bounds = array<i64: 1, 32>}, {transform_indices = @transform_5, window_bounds = array<i64: 32, 32>}]} {
    %c0 = arith.constant 0 : index
    %c0_0 = arith.constant 0 : index
    %0 = vector.load %arg2[%c0, %c0_0] : memref<16x32xf32, #tpu.memory_space<vmem>>, vector<16x32xf32>
    %c0_1 = arith.constant 0 : index
    %c0_2 = arith.constant 0 : index
    %1 = vector.load %arg4[%c0_1, %c0_2] : memref<32x32xf32, #tpu.memory_space<vmem>>, vector<32x32xf32>
    %c0_3 = arith.constant 0 : index
    %c0_4 = arith.constant 0 : index
    %2 = vector.load %arg1[%c0_3, %c0_4] : memref<32x16xf32, #tpu.memory_space<vmem>>, vector<32x16xf32>
    %cst = arith.constant dense<0.000000e+00> : vector<32x32xf32>
    %3 = tpu.matmul %2, %0, %cst {dimension_numbers = #tpu.dot_dimension_numbers<[1], [0], [0], [1], [0, 0, 1, 1], [], []>} : vector<32x16xf32>, vector<16x32xf32>, vector<32x32xf32> -> vector<32x32xf32>
    %c0_5 = arith.constant 0 : index
    %c0_6 = arith.constant 0 : index
    %4 = vector.load %arg3[%c0_5, %c0_6] : memref<1x32xf32, #tpu.memory_space<vmem>>, vector<1x32xf32>
    %5 = vector.broadcast %4 : vector<1x32xf32> to vector<32x32xf32>
    %6 = arith.addf %3, %5 : vector<32x32xf32>
    %cst_7 = arith.constant 0.000000e+00 : f32
    %7 = vector.broadcast %cst_7 : f32 to vector<32x32xf32>
    %8 = arith.maximumf %6, %7 : vector<32x32xf32>
    %cst_8 = arith.constant dense<0.000000e+00> : vector<32x32xf32>
    %9 = tpu.matmul %8, %1, %cst_8 {dimension_numbers = #tpu.dot_dimension_numbers<[1], [0], [0], [1], [0, 0, 1, 1], [], []>} : vector<32x32xf32>, vector<32x32xf32>, vector<32x32xf32> -> vector<32x32xf32>
    %c0_9 = arith.constant 0 : index
    %c0_10 = arith.constant 0 : index
    %10 = vector.load %arg5[%c0_9, %c0_10] : memref<1x32xf32, #tpu.memory_space<vmem>>, vector<1x32xf32>
    %11 = vector.broadcast %10 : vector<1x32xf32> to vector<32x32xf32>
    %12 = arith.addf %9, %11 : vector<32x32xf32>
    %c0_11 = arith.constant 0 : index
    %c0_12 = arith.constant 0 : index
    %13 = vector.load %arg6[%c0_11, %c0_12] : memref<32x32xf32, #tpu.memory_space<vmem>>, vector<32x32xf32>
    tpu.vector_store %arg6[%c0_11, %c0_12], %12 {strides = array<i32>} : memref<32x32xf32, #tpu.memory_space<vmem>>, vector<32x32xf32>,
    return
  }
  func.func @transform_0(%arg0: i32) -> (i32, i32) {
    %c0_i32 = arith.constant 0 : i32
    %c0_i32_0 = arith.constant 0 : i32
    return %arg0, %c0_i32 : i32, i32
  }
  func.func @transform_1(%arg0: i32) -> (i32, i32) {
    %c0_i32 = arith.constant 0 : i32
    %c0_i32_0 = arith.constant 0 : i32
    %c0_i32_1 = arith.constant 0 : i32
    return %c0_i32, %c0_i32_0 : i32, i32
  }
  func.func @transform_2(%arg0: i32) -> (i32, i32) {
    %c0_i32 = arith.constant 0 : i32
    %c0_i32_0 = arith.constant 0 : i32
    %c0_i32_1 = arith.constant 0 : i32
    return %c0_i32, %c0_i32_0 : i32, i32
  }
  func.func @transform_3(%arg0: i32) -> (i32, i32) {
    %c0_i32 = arith.constant 0 : i32
    %c0_i32_0 = arith.constant 0 : i32
    %c0_i32_1 = arith.constant 0 : i32
    return %c0_i32, %c0_i32_0 : i32, i32
  }
  func.func @transform_4(%arg0: i32) -> (i32, i32) {
    %c0_i32 = arith.constant 0 : i32
    %c0_i32_0 = arith.constant 0 : i32
    %c0_i32_1 = arith.constant 0 : i32
    return %c0_i32, %c0_i32_0 : i32, i32
  }
  func.func @transform_5(%arg0: i32) -> (i32, i32) {
    %c0_i32 = arith.constant 0 : i32
    %c0_i32_0 = arith.constant 0 : i32
    return %arg0, %c0_i32 : i32, i32
  }
}

</mosaic_0001>

<llo_original>
// kernel: tpu_custom_call.1
$region0: #{tpu_custom_call.1}
  #allocation0 [shape = 'u32[]', space=smem, size = 0x4, offset = 0x4, fixed_abs, tag = 'smem constant byte address 0x4 - core index']
  #allocation1 [shape = 'u32[144,128]{1,0:T(1,128)}', space=vmem, size = 0x12000, scoped, tag = 'internal scratch']
  %s0 = inlined_call_operand.vmem [shape: f32[32,16], index: 0, kind: input, shape index: {}]
  %s1 = inlined_call_operand.vmem [shape: f32[16,32], index: 1, kind: input, shape index: {}]
  %s2 = inlined_call_operand.vmem [shape: f32[1,32], index: 2, kind: input, shape index: {}]
  %s3 = inlined_call_operand.vmem [shape: f32[32,32], index: 3, kind: input, shape index: {}]
  %s4 = inlined_call_operand.vmem [shape: f32[1,32], index: 4, kind: input, shape index: {}]
  %s5 = inlined_call_operand.hbm [shape: f32[32,32], index: 5, kind: output, shape index: {}]
  %s6 = sld [smem:[#allocation0]]
  $region30: #{tpu_custom_call.1} parent=0
    _
  %s8 = ssub.s32 1, %s6
  %s9 = scalar_select 0, %s8, %s6
  $region1: #{tpu_custom_call.1} parent=0
    #allocation2 [shape = 'u8[16384]{0}', space=vmem, size = 0x4000, scoped, tag = 'output window, operand 0, single buffered']
    #allocation3 [shape = 's32[1]{0}', space=sflag, size = 0x4, scoped, tag = 'scoped memory for tpu_custom_call.1']
    %10 = vsyncpa [#allocation3], 0
    // Predicated region
    $region2: #{tpu_custom_call.1} parent=1 // pred_check
      _
    $region3: #{tpu_custom_call.1} parent=1 // pred_check_branch
      %12 = sbr.rel (0) target = $region5
    $region4: #{tpu_custom_call.1} parent=1 // pred_region
      _
    $region5: #{tpu_custom_call.1} parent=1 // pred_fallthru
      _
    // Predicated region
    $region6: #{tpu_custom_call.1} parent=1 // pred_check
      _
    $region7: #{tpu_custom_call.1} parent=1 // pred_check_branch
      %14 = sbr.rel (0) target = $region9
    $region8: #{tpu_custom_call.1} parent=1 // pred_region
      _
    $region9: #{tpu_custom_call.1} parent=1 // pred_fallthru
      _
    // Predicated region
    $region10: #{tpu_custom_call.1} parent=1 // pred_check
      _
    $region11: #{tpu_custom_call.1} parent=1 // pred_check_branch
      %16 = sbr.rel (0) target = $region13
    $region12: #{tpu_custom_call.1} parent=1 // pred_region
      _
    $region13: #{tpu_custom_call.1} parent=1 // pred_fallthru
      _
    // Predicated region
    $region14: #{tpu_custom_call.1} parent=1 // pred_check
      _
    $region15: #{tpu_custom_call.1} parent=1 // pred_check_branch
      %18 = sbr.rel (0) target = $region17
    $region16: #{tpu_custom_call.1} parent=1 // pred_region
      _
    $region17: #{tpu_custom_call.1} parent=1 // pred_fallthru
      _
    // Predicated region
    $region18: #{tpu_custom_call.1} parent=1 // pred_check
      _
    $region19: #{tpu_custom_call.1} parent=1 // pred_check_branch
      %20 = sbr.rel (0) target = $region21
    $region20: #{tpu_custom_call.1} parent=1 // pred_region
      _
    $region21: #{tpu_custom_call.1} parent=1 // pred_fallthru
      _
    %v21 = vld [vmem:[%s1] sm:$0xff]
    %v22 = vld [vmem:[%s1 + $0x8] sm:$0xff]
    %v23 = vld [vmem:[%s3] sm:$0xff]
    %v24 = vld [vmem:[%s3 + $0x8] sm:$0xff]
    %v25 = vld [vmem:[%s3 + $0x10] sm:$0xff]
    %v26 = vld [vmem:[%s3 + $0x18] sm:$0xff]
    %v27 = vld [vmem:[%s0] sm:$0xff]
    %v28 = vld [vmem:[%s0 + $0x8] sm:$0xff]
    %v29 = vld [vmem:[%s0 + $0x10] sm:$0xff]
    %v30 = vld [vmem:[%s0 + $0x18] sm:$0xff]
    %v31 = vld [vmem:[%s2] sm:$0x1]
    %v33 = vlaneseq
    %v34 = vshrl.u32 %v33, 7
    %v35 = vsub.s32 0, %v34
    %v36 = vrot.slane %v31, %v35
    %vm38 = vcmask 130048
    %v40 = vsel %vm38, %v27, 0
    %v43 = vsel %vm38, %v28, 0
    %v46 = vsel %vm38, %v29, 0
    %v49 = vsel %vm38, %v30, 0
    %51 = vmatprep.subr.mxu0 0.0
    %52 = vmatpush1.msra.mxu0 0.0
    %53 = vmatprep.subr.mxu0 0.0
    %54 = vmatpush1.msra.mxu0 0.0
    %55 = vmatprep.subr.mxu0 0.0
    %56 = vmatpush1.msra.mxu0 0.0
    %57 = vmatprep.subr.mxu0 0.0
    %58 = vmatpush1.msra.mxu0 0.0
    %59 = vmatprep.subr.mxu0 0.0
    %60 = vmatpush1.msra.mxu0 0.0
    %61 = vmatprep.subr.mxu0 0.0
    %62 = vmatpush1.msra.mxu0 0.0
    %63 = vmatprep.subr.mxu0 0.0
    %64 = vmatpush1.msra.mxu0 0.0
    %65 = vmatprep.subr.mxu0 0.0
    %66 = vmatpush1.msra.mxu0 0.0
    %67 = vmatprep.subr.mxu0 0.0
    %68 = vmatpush1.msra.mxu0 0.0
    %69 = vmatprep.subr.mxu0 0.0
    %70 = vmatpush1.msra.mxu0 0.0
    %71 = vmatprep.subr.mxu0 0.0
    %72 = vmatpush1.msra.mxu0 0.0
    %73 = vmatprep.subr.mxu0 0.0
    %74 = vmatpush1.msra.mxu0 0.0
    %75 = vmatprep.subr.mxu0 0.0
    %76 = vmatpush1.msra.mxu0 0.0
    %77 = vmatprep.subr.mxu0 0.0
    %78 = vmatpush1.msra.mxu0 0.0
    %79 = vmatprep.subr.mxu0 0.0
    %80 = vmatpush1.msra.mxu0 %v22
    %81 = vmatprep.subr.mxu0 0.0
    %82 = vmatpush1.msra.mxu0 %v21
    %83 = vmatprep.subr.mxu0 0.0
    %84 = vmatpush2.msra.mxu0 0.0
    %85 = vmatprep.subr.mxu0 0.0
    %86 = vmatpush2.msra.mxu0 0.0
    %87 = vmatprep.subr.mxu0 0.0
    %88 = vmatpush2.msra.mxu0 0.0
    %89 = vmatprep.subr.mxu0 0.0
    %90 = vmatpush2.msra.mxu0 0.0
    %91 = vmatprep.subr.mxu0 0.0
    %92 = vmatpush2.msra.mxu0 0.0
    %93 = vmatprep.subr.mxu0 0.0
    %94 = vmatpush2.msra.mxu0 0.0
    %95 = vmatprep.subr.mxu0 0.0
    %96 = vmatpush2.msra.mxu0 0.0
    %97 = vmatprep.subr.mxu0 0.0
    %98 = vmatpush2.msra.mxu0 0.0
    %99 = vmatprep.subr.mxu0 0.0
    %100 = vmatpush2.msra.mxu0 0.0
    %101 = vmatprep.subr.mxu0 0.0
    %102 = vmatpush2.msra.mxu0 0.0
    %103 = vmatprep.subr.mxu0 0.0
    %104 = vmatpush2.msra.mxu0 0.0
    %105 = vmatprep.subr.mxu0 0.0
    %106 = vmatpush2.msra.mxu0 0.0
    %107 = vmatprep.subr.mxu0 0.0
    %108 = vmatpush2.msra.mxu0 0.0
    %109 = vmatprep.subr.mxu0 0.0
    %110 = vmatpush2.msra.mxu0 0.0
    %111 = vmatprep.subr.mxu0 0.0
    %112 = vmatpush2.msra.mxu0 0.0
    %113 = vmatprep.subr.mxu0 0.0
    %114 = vmatpush2.msra.mxu0 0.0
    %115 = vmatprep.mubr.f32.mxu0 0.0
    %116 = vmatmul.mubr.f32.gmra.mxu0 %v40
    %v117 = vpop.f32.mrf.mxu0
    %v118 = vadd.f32 %v36, %v117
    %v119 = vpop.f32.mrf.mxu0
    %120 = vmatprep.mubr.f32.mxu0 0.0
    %121 = vmatmul.mubr.f32.gmra.mxu0 %v43
    %v122 = vpop.f32.mrf.mxu0
    %v123 = vadd.f32 %v36, %v122
    %v124 = vpop.f32.mrf.mxu0
    %125 = vmatprep.mubr.f32.mxu0 0.0
    %126 = vmatmul.mubr.f32.gmra.mxu0 %v46
    %v127 = vpop.f32.mrf.mxu0
    %v128 = vadd.f32 %v36, %v127
    %v129 = vpop.f32.mrf.mxu0
    %130 = vmatprep.mubr.f32.mxu0 0.0
    %131 = vmatmul.mubr.f32.gmra.mxu0 %v49
    %v132 = vpop.f32.mrf.mxu0
    %v133 = vadd.f32 %v36, %v132
    %v134 = vpop.f32.mrf.mxu0
    %135 = vdwg.mxu0
    %v136 = vmax.f32 %v118, 0.0
    %v137 = vmax.f32 %v123, 0.0
    %v138 = vmax.f32 %v128, 0.0
    %v139 = vmax.f32 %v133, 0.0
    %v140 = vld [vmem:[%s4] sm:$0x1]
    %v142 = vlaneseq
    %v143 = vshrl.u32 %v142, 7
    %v144 = vsub.s32 0, %v143
    %v145 = vrot.slane %v140, %v144
    %vm147 = vcmask 261120
    %v149 = vsel %vm147, %v136, 0
    %v152 = vsel %vm147, %v137, 0
    %v155 = vsel %vm147, %v138, 0
    %v158 = vsel %vm147, %v139, 0
    %160 = vmatprep.subr.mxu0 0.0
    %161 = vmatpush1.msra.mxu0 0.0
    %162 = vmatprep.subr.mxu0 0.0
    %163 = vmatpush1.msra.mxu0 0.0
    %164 = vmatprep.subr.mxu0 0.0
    %165 = vmatpush1.msra.mxu0 0.0
    %166 = vmatprep.subr.mxu0 0.0
    %167 = vmatpush1.msra.mxu0 0.0
    %168 = vmatprep.subr.mxu0 0.0
    %169 = vmatpush1.msra.mxu0 0.0
    %170 = vmatprep.subr.mxu0 0.0
    %171 = vmatpush1.msra.mxu0 0.0
    %172 = vmatprep.subr.mxu0 0.0
    %173 = vmatpush1.msra.mxu0 0.0
    %174 = vmatprep.subr.mxu0 0.0
    %175 = vmatpush1.msra.mxu0 0.0
    %176 = vmatprep.subr.mxu0 0.0
    %177 = vmatpush1.msra.mxu0 0.0
    %178 = vmatprep.subr.mxu0 0.0
    %179 = vmatpush1.msra.mxu0 0.0
    %180 = vmatprep.subr.mxu0 0.0
    %181 = vmatpush1.msra.mxu0 0.0
    %182 = vmatprep.subr.mxu0 0.0
    %183 = vmatpush1.msra.mxu0 0.0
    %184 = vmatprep.subr.mxu0 0.0
    %185 = vmatpush1.msra.mxu0 %v26
    %186 = vmatprep.subr.mxu0 0.0
    %187 = vmatpush1.msra.mxu0 %v25
    %188 = vmatprep.subr.mxu0 0.0
    %189 = vmatpush1.msra.mxu0 %v24
    %190 = vmatprep.subr.mxu0 0.0
    %191 = vmatpush1.msra.mxu0 %v23
    %192 = vmatprep.subr.mxu0 0.0
    %193 = vmatpush2.msra.mxu0 0.0
    %194 = vmatprep.subr.mxu0 0.0
    %195 = vmatpush2.msra.mxu0 0.0
    %196 = vmatprep.subr.mxu0 0.0
    %197 = vmatpush2.msra.mxu0 0.0
    %198 = vmatprep.subr.mxu0 0.0
    %199 = vmatpush2.msra.mxu0 0.0
    %200 = vmatprep.subr.mxu0 0.0
    %201 = vmatpush2.msra.mxu0 0.0
    %202 = vmatprep.subr.mxu0 0.0
    %203 = vmatpush2.msra.mxu0 0.0
    %204 = vmatprep.subr.mxu0 0.0
    %205 = vmatpush2.msra.mxu0 0.0
    %206 = vmatprep.subr.mxu0 0.0
    %207 = vmatpush2.msra.mxu0 0.0
    %208 = vmatprep.subr.mxu0 0.0
    %209 = vmatpush2.msra.mxu0 0.0
    %210 = vmatprep.subr.mxu0 0.0
    %211 = vmatpush2.msra.mxu0 0.0
    %212 = vmatprep.subr.mxu0 0.0
    %213 = vmatpush2.msra.mxu0 0.0
    %214 = vmatprep.subr.mxu0 0.0
    %215 = vmatpush2.msra.mxu0 0.0
    %216 = vmatprep.subr.mxu0 0.0
    %217 = vmatpush2.msra.mxu0 0.0
    %218 = vmatprep.subr.mxu0 0.0
    %219 = vmatpush2.msra.mxu0 0.0
    %220 = vmatprep.subr.mxu0 0.0
    %221 = vmatpush2.msra.mxu0 0.0
    %222 = vmatprep.subr.mxu0 0.0
    %223 = vmatpush2.msra.mxu0 0.0
    %224 = vmatprep.mubr.f32.mxu0 0.0
    %225 = vmatmul.mubr.f32.gmra.mxu0 %v149
    %v226 = vpop.f32.mrf.mxu0
    %v227 = vadd.f32 %v145, %v226
    %v228 = vpop.f32.mrf.mxu0
    %229 = vmatprep.mubr.f32.mxu0 0.0
    %230 = vmatmul.mubr.f32.gmra.mxu0 %v152
    %v231 = vpop.f32.mrf.mxu0
    %v232 = vadd.f32 %v145, %v231
    %v233 = vpop.f32.mrf.mxu0
    %234 = vmatprep.mubr.f32.mxu0 0.0
    %235 = vmatmul.mubr.f32.gmra.mxu0 %v155
    %v236 = vpop.f32.mrf.mxu0
    %v237 = vadd.f32 %v145, %v236
    %v238 = vpop.f32.mrf.mxu0
    %239 = vmatprep.mubr.f32.mxu0 0.0
    %240 = vmatmul.mubr.f32.gmra.mxu0 %v158
    %v241 = vpop.f32.mrf.mxu0
    %v242 = vadd.f32 %v145, %v241
    %v243 = vpop.f32.mrf.mxu0
    %244 = vdwg.mxu0
    %245 = vst.msk [vmem:[#allocation2] sm:$0xff] %vm147, %v227
    %246 = vst.msk [vmem:[#allocation2 + $0x8] sm:$0xff] %vm147, %v232
    %247 = vst.msk [vmem:[#allocation2 + $0x10] sm:$0xff] %vm147, %v237
    %248 = vst.msk [vmem:[#allocation2 + $0x18] sm:$0xff] %vm147, %v242
    // Predicated region
    $region22: #{tpu_custom_call.1} parent=1 // pred_check
      _
    $region23: #{tpu_custom_call.1} parent=1 // pred_check_branch
      %250 = sbr.rel (0) target = $region25
    $region24: #{tpu_custom_call.1} parent=1 // pred_region
      %s252 = ssub.s32 512, 512
      %253 = vsyncadd [#allocation3], %s252
      %s254 = sshll.u32 [#allocation2], 4
      %s255 = int_to_ptr.vmem [resolvable:$true] %s254
      %260 = dma.vmem_to_hbm [thread:$0]  %s255, 512, %s5, [#allocation3], 128, 128, 8
    $region25: #{tpu_custom_call.1} parent=1 // pred_fallthru
      _
    // Predicated region
    $region26: #{tpu_custom_call.1} parent=1 // pred_check
      _
    $region27: #{tpu_custom_call.1} parent=1 // pred_check_branch
      %262 = sbr.rel (0) target = $region29
    $region28: #{tpu_custom_call.1} parent=1 // pred_region
      %263 = dma.done [#allocation3], 512
    $region29: #{tpu_custom_call.1} parent=1 // pred_fallthru
      _
    %264 = vsyncpa [#allocation3], 1

</llo_original>
